<compile_context>
chip_gen: v7x
topology: tpu7x:2x2x1
jax: 0.10.0
libtpu: 0.0.40
codegen_flags: <defaults>
</compile_context>

<pallas_src>
import jax
import jax.numpy as jnp
from jax import lax
from jax.experimental import pallas as pl
from jax.experimental.pallas import tpu as pltpu


def mlp_kernel(x_ref, w1_ref, b1_ref, w2_ref, b2_ref, w3_ref, b3_ref, o_ref):
    """One batch tile. x arrives (tb, d0); activations are feature-major (f, tb)."""
    # Cast the streamed f32 x tile to the compute dtype in VMEM (no wrapper pass).
    xt = x_ref[...].astype(w1_ref.dtype)                       # (tb, d0)
    # Layer 1: contract d0 of W1 (d1, d0) with d0 of x (tb, d0) -> (d1, tb).
    # Output is feature-major (batch on lanes); f32 accumulation on the MXU.
    h1 = lax.dot_general(w1_ref[...], xt,
                         dimension_numbers=(((1,), (1,)), ((), ())),
                         preferred_element_type=jnp.float32)
    h1 = jnp.maximum(h1 + b1_ref[...], 0.0)
    # Layer 2: (d2, d1) @ (d1, tb) -> (d2, tb).
    h2 = jnp.dot(w2_ref[...], h1.astype(w2_ref.dtype),
                 preferred_element_type=jnp.float32)
    h2 = jnp.maximum(h2 + b2_ref[...], 0.0)
    # Output layer (d2 -> 1): VPU multiply + cross-sublane reduce instead of an
    # N=1 MXU matmul; result is already lane-dense (1, tb).
    out = jnp.sum(h2 * w3_ref[...], axis=0, keepdims=True)
    o_ref[...] = (out + b3_ref[0, 0]).astype(o_ref.dtype)


def _choose_batch_tile(B, d0, d1, d2, compute_itemsize):
    """Pick the batch (lane) tile size.

    Counts the full per-step VMEM footprint (streamed x/out tiles double-
    buffered PLUS the f32 intermediates materialized per tile), caps the tile
    at 16384 lanes, and for large B guarantees >= 4 grid steps so v7x gets
    >= 2 steps per TensorCore with the batch axis marked "parallel".
    Budget ~24 MiB: safe on v7x (64 MiB physical / 32 MiB scoped default) and
    enabled on v5e by the explicit vmem_limit_bytes in CompilerParams.
    """
    if B <= 512:
        return B  # single tile; block dims equal the full array dims
    cs = compute_itemsize
    # Per-lane bytes for one grid step:
    #   x tile (f32, double-buffered)            : 2 * d0 * 4
    #   out tile (f32, double-buffered)          : 2 * 4
    #   x cast to compute dtype                  : d0 * cs
    #   h1 (f32) + h1 cast + h2 (f32) + h2*w3    : (4 + cs) * d1 + 8 * d2
    per_lane = 2 * (d0 * 4 + 4) + d0 * cs + (4 + cs) * d1 + 8 * d2
    weight_bytes = (d1 * d0 + d2 * d1) * cs + 4 * (d1 + 2 * d2 + 1)
    budget = 24 * 1024 * 1024
    tb = (budget - 2 * weight_bytes) // per_lane
    tb = min(tb, 16384)              # per review: target 4096-16384 lanes
    tb = min(tb, max(128, B // 4))   # >= 4 grid steps -> >= 2 per TC on v7x
    tb = max(128, (tb // 128) * 128) # lane-dense multiple of 128
    return int(tb)


def net_forward(x, params, *, tb=None, compute_dtype=jnp.bfloat16,
                lane_major_output=False):
    """Pallas implementation of Net.forward.

    x:      (B, d0) float32 (natural layout; no host-side transpose/pad)
    params: PyTorch nn.Linear layout --
            w1 (d1, d0), b1 (d1,), w2 (d2, d1), b2 (d2,), w3 (1, d2), b3 (1,)
    Returns (B, 1) float32, or (1, B) lane-major if lane_major_output=True.
    """
    B, d0 = x.shape
    d1 = params["w1"].shape[0]
    d2 = params["w2"].shape[0]
    cs = jnp.dtype(compute_dtype).itemsize
    if tb is None:
        tb = _choose_batch_tile(B, d0, d1, d2, cs)
    n_tiles = pl.cdiv(B, tb)         # ragged last tile handled by Pallas masking

    x = x.astype(jnp.float32)        # streamed as-is; compute-dtype cast is in-kernel
    w1 = params["w1"].astype(compute_dtype)
    w2 = params["w2"].astype(compute_dtype)
    b1 = params["b1"].astype(jnp.float32).reshape(d1, 1)
    b2 = params["b2"].astype(jnp.float32).reshape(d2, 1)
    w3 = params["w3"].astype(jnp.float32).reshape(d2, 1)   # column vector
    b3 = params["b3"].astype(jnp.float32).reshape(1, 1)    # SMEM scalar

    out = pl.pallas_call(
        mlp_kernel,
        out_shape=jax.ShapeDtypeStruct((1, B), jnp.float32),
        grid_spec=pltpu.PrefetchScalarGridSpec(
            num_scalar_prefetch=0,
            grid=(n_tiles,),
            in_specs=[
                pl.BlockSpec((tb, d0), lambda i: (i, 0)),    # x tile, natural layout
                pl.BlockSpec((d1, d0), lambda i: (0, 0)),    # W1 (resident)
                pl.BlockSpec((d1, 1), lambda i: (0, 0)),     # b1
                pl.BlockSpec((d2, d1), lambda i: (0, 0)),    # W2 (resident)
                pl.BlockSpec((d2, 1), lambda i: (0, 0)),     # b2
                pl.BlockSpec((d2, 1), lambda i: (0, 0)),     # w3 column
                pl.BlockSpec(memory_space=pltpu.MemorySpace.SMEM),  # b3 scalar
            ],
            out_specs=pl.BlockSpec((1, tb), lambda i: (0, i)),  # lane-dense out
        ),
        compiler_params=pltpu.CompilerParams(
            dimension_semantics=("parallel",),   # batch axis -> megacore on v7x
            vmem_limit_bytes=32 * 1024 * 1024,   # lift v5e's 16 MiB scoped default
        ),
    )(x, w1, b1, w2, b2, w3, b3)

    if lane_major_output:
        return out                   # (1, B), skips the re-layout pass
    return out[0][:, None]           # (B, 1)


def init_params(key, architecture):
    """Deterministic init in the PyTorch nn.Linear (out, in) layout."""
    d0, d1, d2 = architecture
    k1, k2, k3, k4, k5, k6 = jax.random.split(key, 6)

    def uinit(k, shape, fan_in):
        bound = 1.0 / jnp.sqrt(fan_in)
        return jax.random.uniform(k, shape, jnp.float32, -bound, bound)

    return {
        "w1": uinit(k1, (d1, d0), d0), "b1": uinit(k2, (d1,), d0),
        "w2": uinit(k3, (d2, d1), d1), "b2": uinit(k4, (d2,), d1),
        "w3": uinit(k5, (1, d2), d2),  "b3": uinit(k6, (1,), d2),
    }


def net_forward_ref(x, p):
    """Pure-JAX float32 reference (PyTorch-layout weights)."""
    h1 = jnp.maximum(x @ p["w1"].T + p["b1"], 0.0)
    h2 = jnp.maximum(h1 @ p["w2"].T + p["b2"], 0.0)
    return h2 @ p["w3"].T + p["b3"]


if __name__ == "__main__":
    # architecture = [d0, d1, d2]; output dim is 1 (as in the module).
    architecture = (32, 64, 32)

    key = jax.random.PRNGKey(0)
    kx, kp = jax.random.split(key)
    params = init_params(kp, architecture)

    # B=300: small, but with tb forced to 128 it exercises the multi-tile path
    # with a ragged (partially out-of-bounds) last tile.
    B = 300
    x = jax.random.normal(kx, (B, architecture[0]), dtype=jnp.float32)
    ref = net_forward_ref(x, params)

    # Auto tile chooser (single tile at this small B), bf16 compute / f32 acc.
    out_bf16 = jax.block_until_ready(net_forward(x, params))
    assert out_bf16.shape == (B, 1)
    assert jnp.allclose(out_bf16, ref, atol=5e-2, rtol=5e-2)

    # Multi-tile ragged path (grid = cdiv(300, 128) = 3), float32 compute.
    out_f32 = jax.block_until_ready(
        net_forward(x, params, tb=128, compute_dtype=jnp.float32))
    assert out_f32.shape == (B, 1)
    assert jnp.allclose(out_f32, ref, atol=1e-5, rtol=1e-5)

    # Small-batch single-tile path (block dims equal full array dims).
    xs = x[:10]
    out_small = jax.block_until_ready(
        net_forward(xs, params, compute_dtype=jnp.float32))
    assert out_small.shape == (10, 1)
    assert jnp.allclose(out_small, net_forward_ref(xs, params),
                        atol=1e-5, rtol=1e-5)

    print("KERNEL_OK")
</pallas_src>

<mosaic_0001>
module attributes {stable_mosaic.version = 11 : i64} {
  func.func @mlp_kernel(%arg0: i32, %arg1: memref<300x32xf32, #tpu.memory_space<vmem>>, %arg2: memref<64x32xbf16, #tpu.memory_space<vmem>>, %arg3: memref<64x1xf32, #tpu.memory_space<vmem>>, %arg4: memref<32x64xbf16, #tpu.memory_space<vmem>>, %arg5: memref<32x1xf32, #tpu.memory_space<vmem>>, %arg6: memref<32x1xf32, #tpu.memory_space<vmem>>, %arg7: memref<1x1xf32, #tpu.memory_space<smem>>, %arg8: memref<1x300xf32, #tpu.memory_space<vmem>>) attributes {dimension_semantics = [#tpu.dimension_semantics<parallel>], iteration_bounds = array<i64: 1>, scalar_prefetch = 0 : i64, scratch_operands = 0 : i64, tpu.core_type = #tpu.core_type<tc>, window_params = [{transform_indices = @transform_0, window_bounds = array<i64: 300, 32>}, {pipeline_mode = #tpu.pipeline_mode<synchronous>, transform_indices = @transform_1, window_bounds = array<i64: 64, 32>}, {pipeline_mode = #tpu.pipeline_mode<synchronous>, transform_indices = @transform_2, window_bounds = array<i64: 64, 1>}, {pipeline_mode = #tpu.pipeline_mode<synchronous>, transform_indices = @transform_3, window_bounds = array<i64: 32, 64>}, {pipeline_mode = #tpu.pipeline_mode<synchronous>, transform_indices = @transform_4, window_bounds = array<i64: 32, 1>}, {pipeline_mode = #tpu.pipeline_mode<synchronous>, transform_indices = @transform_5, window_bounds = array<i64: 32, 1>}, {transform_indices = @transform_6, window_bounds = array<i64: 1, 1>}, {transform_indices = @transform_7, window_bounds = array<i64: 1, 300>}]} {
    %c0 = arith.constant 0 : index
    %c0_0 = arith.constant 0 : index
    %0 = vector.load %arg1[%c0, %c0_0] : memref<300x32xf32, #tpu.memory_space<vmem>>, vector<300x32xf32>
    %1 = arith.truncf %0 : vector<300x32xf32> to vector<300x32xbf16>
    %c0_1 = arith.constant 0 : index
    %c0_2 = arith.constant 0 : index
    %2 = vector.load %arg2[%c0_1, %c0_2] : memref<64x32xbf16, #tpu.memory_space<vmem>>, vector<64x32xbf16>
    %cst = arith.constant dense<0.000000e+00> : vector<64x300xf32>
    %3 = tpu.matmul %2, %1, %cst {dimension_numbers = #tpu.dot_dimension_numbers<[1], [1], [0], [0], [0, 0, 1, 0], [], []>} : vector<64x32xbf16>, vector<300x32xbf16>, vector<64x300xf32> -> vector<64x300xf32>
    %c0_3 = arith.constant 0 : index
    %c0_4 = arith.constant 0 : index
    %4 = vector.load %arg3[%c0_3, %c0_4] : memref<64x1xf32, #tpu.memory_space<vmem>>, vector<64x1xf32>
    %5 = vector.broadcast %4 : vector<64x1xf32> to vector<64x300xf32>
    %6 = arith.addf %3, %5 : vector<64x300xf32>
    %cst_5 = arith.constant 0.000000e+00 : f32
    %7 = vector.broadcast %cst_5 : f32 to vector<64x300xf32>
    %8 = arith.maximumf %6, %7 : vector<64x300xf32>
    %c0_6 = arith.constant 0 : index
    %c0_7 = arith.constant 0 : index
    %9 = vector.load %arg4[%c0_6, %c0_7] : memref<32x64xbf16, #tpu.memory_space<vmem>>, vector<32x64xbf16>
    %10 = arith.truncf %8 : vector<64x300xf32> to vector<64x300xbf16>
    %cst_8 = arith.constant dense<0.000000e+00> : vector<32x300xf32>
    %11 = tpu.matmul %9, %10, %cst_8 {dimension_numbers = #tpu.dot_dimension_numbers<[1], [0], [0], [1], [0, 0, 1, 1], [], []>} : vector<32x64xbf16>, vector<64x300xbf16>, vector<32x300xf32> -> vector<32x300xf32>
    %c0_9 = arith.constant 0 : index
    %c0_10 = arith.constant 0 : index
    %12 = vector.load %arg5[%c0_9, %c0_10] : memref<32x1xf32, #tpu.memory_space<vmem>>, vector<32x1xf32>
    %13 = vector.broadcast %12 : vector<32x1xf32> to vector<32x300xf32>
    %14 = arith.addf %11, %13 : vector<32x300xf32>
    %cst_11 = arith.constant 0.000000e+00 : f32
    %15 = vector.broadcast %cst_11 : f32 to vector<32x300xf32>
    %16 = arith.maximumf %14, %15 : vector<32x300xf32>
    %c0_12 = arith.constant 0 : index
    %c0_13 = arith.constant 0 : index
    %17 = vector.load %arg6[%c0_12, %c0_13] : memref<32x1xf32, #tpu.memory_space<vmem>>, vector<32x1xf32>
    %18 = vector.broadcast %17 : vector<32x1xf32> to vector<32x300xf32>
    %19 = arith.mulf %16, %18 : vector<32x300xf32>
    %cst_14 = arith.constant dense<0.000000e+00> : vector<300xf32>
    %20 = vector.multi_reduction <add>, %19, %cst_14 [0] : vector<32x300xf32> to vector<300xf32>
    %21 = vector.shape_cast %20 : vector<300xf32> to vector<1x300xf32>
    %c0_15 = arith.constant 0 : index
    %c0_16 = arith.constant 0 : index
    %22 = memref.load %arg7[%c0_15, %c0_16] : memref<1x1xf32, #tpu.memory_space<smem>>
    %23 = vector.broadcast %22 : f32 to vector<1x300xf32>
    %24 = arith.addf %21, %23 : vector<1x300xf32>
    %c0_17 = arith.constant 0 : index
    %c0_18 = arith.constant 0 : index
    %25 = vector.load %arg8[%c0_17, %c0_18] : memref<1x300xf32, #tpu.memory_space<vmem>>, vector<1x300xf32>
    tpu.vector_store %arg8[%c0_17, %c0_18], %24 {strides = array<i32>} : memref<1x300xf32, #tpu.memory_space<vmem>>, vector<1x300xf32>,
    return
  }
  func.func @transform_0(%arg0: i32) -> (i32, i32) {
    %c0_i32 = arith.constant 0 : i32
    %c0_i32_0 = arith.constant 0 : i32
    return %arg0, %c0_i32 : i32, i32
  }
  func.func @transform_1(%arg0: i32) -> (i32, i32) {
    %c0_i32 = arith.constant 0 : i32
    %c0_i32_0 = arith.constant 0 : i32
    %c0_i32_1 = arith.constant 0 : i32
    return %c0_i32, %c0_i32_0 : i32, i32
  }
  func.func @transform_2(%arg0: i32) -> (i32, i32) {
    %c0_i32 = arith.constant 0 : i32
    %c0_i32_0 = arith.constant 0 : i32
    %c0_i32_1 = arith.constant 0 : i32
    return %c0_i32, %c0_i32_0 : i32, i32
  }
  func.func @transform_3(%arg0: i32) -> (i32, i32) {
    %c0_i32 = arith.constant 0 : i32
    %c0_i32_0 = arith.constant 0 : i32
    %c0_i32_1 = arith.constant 0 : i32
    return %c0_i32, %c0_i32_0 : i32, i32
  }
  func.func @transform_4(%arg0: i32) -> (i32, i32) {
    %c0_i32 = arith.constant 0 : i32
    %c0_i32_0 = arith.constant 0 : i32
    %c0_i32_1 = arith.constant 0 : i32
    return %c0_i32, %c0_i32_0 : i32, i32
  }
  func.func @transform_5(%arg0: i32) -> (i32, i32) {
    %c0_i32 = arith.constant 0 : i32
    %c0_i32_0 = arith.constant 0 : i32
    %c0_i32_1 = arith.constant 0 : i32
    return %c0_i32, %c0_i32_0 : i32, i32
  }
  func.func @transform_6(%arg0: i32) -> (i32, i32) {
    %c0_i32 = arith.constant 0 : i32
    %c0_i32_0 = arith.constant 0 : i32
    %c0_i32_1 = arith.constant 0 : i32
    return %c0_i32, %c0_i32_0 : i32, i32
  }
  func.func @transform_7(%arg0: i32) -> (i32, i32) {
    %c0_i32 = arith.constant 0 : i32
    %c0_i32_0 = arith.constant 0 : i32
    return %c0_i32, %arg0 : i32, i32
  }
}

</mosaic_0001>

<llo_original>
// kernel: tpu_custom_call.1
$region0: #{tpu_custom_call.1}
  #allocation0 [shape = 'u32[]', space=smem, size = 0x4, offset = 0x4, fixed_abs, tag = 'smem constant byte address 0x4 - core index']
  #allocation1 [shape = 'u32[144,128]{1,0:T(1,128)}', space=vmem, size = 0x12000, scoped, tag = 'internal scratch']
  #allocation2 [shape = 'f32[1,1]{1,0:T(1,128)S(6)}', space=smem, size = 0x200, scoped, tag = 'scoped memory for tpu_custom_call.1']
  %s0 = inlined_call_operand.vmem [shape: f32[300,32], index: 0, kind: input, shape index: {}]
  %s1 = inlined_call_operand.vmem [shape: bf16[64,32], index: 1, kind: input, shape index: {}]
  %s2 = inlined_call_operand.vmem [shape: f32[64,1], index: 2, kind: input, shape index: {}]
  %s3 = inlined_call_operand.vmem [shape: bf16[32,64], index: 3, kind: input, shape index: {}]
  %s4 = inlined_call_operand.vmem [shape: f32[32,1], index: 4, kind: input, shape index: {}]
  %s5 = inlined_call_operand.vmem [shape: f32[32,1], index: 5, kind: input, shape index: {}]
  %s6 = inlined_call_operand.<no memory space> [shape: f32[1,1], index: 6, kind: input, shape index: {}]
  %s7 = inlined_call_operand.hbm [shape: f32[1,300], index: 7, kind: output, shape index: {}]
  %s8 = sld [smem:[#allocation0]]
  $region38: #{tpu_custom_call.1} parent=0
    _
  %s10 = ssub.s32 1, %s8
  %s11 = scalar_select 0, %s10, %s8
  %12 = sst [smem:[#allocation2]] %s6
  $region1: #{tpu_custom_call.1} parent=0
    #allocation3 [shape = 'u8[1536]{0}', space=vmem, size = 0x800, scoped, tag = 'output window, operand 0, single buffered']
    #allocation4 [shape = 's32[1]{0}', space=sflag, size = 0x4, scoped, tag = 'scoped memory for tpu_custom_call.1']
    %13 = vsyncpa [#allocation4], 0
    // Predicated region
    $region2: #{tpu_custom_call.1} parent=1 // pred_check
      _
    $region3: #{tpu_custom_call.1} parent=1 // pred_check_branch
      %15 = sbr.rel (0) target = $region5
    $region4: #{tpu_custom_call.1} parent=1 // pred_region
      _
    $region5: #{tpu_custom_call.1} parent=1 // pred_fallthru
      _
    // Predicated region
    $region6: #{tpu_custom_call.1} parent=1 // pred_check
      _
    $region7: #{tpu_custom_call.1} parent=1 // pred_check_branch
      %17 = sbr.rel (0) target = $region9
    $region8: #{tpu_custom_call.1} parent=1 // pred_region
      _
    $region9: #{tpu_custom_call.1} parent=1 // pred_fallthru
      _
    // Predicated region
    $region10: #{tpu_custom_call.1} parent=1 // pred_check
      _
    $region11: #{tpu_custom_call.1} parent=1 // pred_check_branch
      %19 = sbr.rel (0) target = $region13
    $region12: #{tpu_custom_call.1} parent=1 // pred_region
      _
    $region13: #{tpu_custom_call.1} parent=1 // pred_fallthru
      _
    // Predicated region
    $region14: #{tpu_custom_call.1} parent=1 // pred_check
      _
    $region15: #{tpu_custom_call.1} parent=1 // pred_check_branch
      %21 = sbr.rel (0) target = $region17
    $region16: #{tpu_custom_call.1} parent=1 // pred_region
      _
    $region17: #{tpu_custom_call.1} parent=1 // pred_fallthru
      _
    // Predicated region
    $region18: #{tpu_custom_call.1} parent=1 // pred_check
      _
    $region19: #{tpu_custom_call.1} parent=1 // pred_check_branch
      %23 = sbr.rel (0) target = $region21
    $region20: #{tpu_custom_call.1} parent=1 // pred_region
      _
    $region21: #{tpu_custom_call.1} parent=1 // pred_fallthru
      _
    // Predicated region
    $region22: #{tpu_custom_call.1} parent=1 // pred_check
      _
    $region23: #{tpu_custom_call.1} parent=1 // pred_check_branch
      %25 = sbr.rel (0) target = $region25
    $region24: #{tpu_custom_call.1} parent=1 // pred_region
      _
    $region25: #{tpu_custom_call.1} parent=1 // pred_fallthru
      _
    // Predicated region
    $region26: #{tpu_custom_call.1} parent=1 // pred_check
      _
    $region27: #{tpu_custom_call.1} parent=1 // pred_check_branch
      %27 = sbr.rel (0) target = $region29
    $region28: #{tpu_custom_call.1} parent=1 // pred_region
      _
    $region29: #{tpu_custom_call.1} parent=1 // pred_fallthru
      _
    %v29 = vld [vmem:[%s0] sm:$0xff]
    %v30 = vld [vmem:[%s0 + $0x8] sm:$0xff]
    %v31 = vld [vmem:[%s0 + $0x10] sm:$0xff]
    %v32 = vld [vmem:[%s0 + $0x18] sm:$0xff]
    %v33 = vld [vmem:[%s0 + $0x20] sm:$0xff]
    %v34 = vld [vmem:[%s0 + $0x28] sm:$0xff]
    %v35 = vld [vmem:[%s0 + $0x30] sm:$0xff]
    %v36 = vld [vmem:[%s0 + $0x38] sm:$0xff]
    %v37 = vld [vmem:[%s0 + $0x40] sm:$0xff]
    %v38 = vld [vmem:[%s0 + $0x48] sm:$0xff]
    %v39 = vld [vmem:[%s0 + $0x50] sm:$0xff]
    %v40 = vld [vmem:[%s0 + $0x58] sm:$0xff]
    %v41 = vld [vmem:[%s0 + $0x60] sm:$0xff]
    %v42 = vld [vmem:[%s0 + $0x68] sm:$0xff]
    %v43 = vld [vmem:[%s0 + $0x70] sm:$0xff]
    %v44 = vld [vmem:[%s0 + $0x78] sm:$0xff]
    %v45 = vld [vmem:[%s0 + $0x80] sm:$0xff]
    %v46 = vld [vmem:[%s0 + $0x88] sm:$0xff]
    %v47 = vld [vmem:[%s0 + $0x90] sm:$0xff]
    %v48 = vld [vmem:[%s0 + $0x98] sm:$0xff]
    %v49 = vld [vmem:[%s0 + $0xa0] sm:$0xff]
    %v50 = vld [vmem:[%s0 + $0xa8] sm:$0xff]
    %v51 = vld [vmem:[%s0 + $0xb0] sm:$0xff]
    %v52 = vld [vmem:[%s0 + $0xb8] sm:$0xff]
    %v53 = vld [vmem:[%s0 + $0xc0] sm:$0xff]
    %v54 = vld [vmem:[%s0 + $0xc8] sm:$0xff]
    %v55 = vld [vmem:[%s0 + $0xd0] sm:$0xff]
    %v56 = vld [vmem:[%s0 + $0xd8] sm:$0xff]
    %v57 = vld [vmem:[%s0 + $0xe0] sm:$0xff]
    %v58 = vld [vmem:[%s0 + $0xe8] sm:$0xff]
    %v59 = vld [vmem:[%s0 + $0xf0] sm:$0xff]
    %v60 = vld [vmem:[%s0 + $0xf8] sm:$0xff]
    %v61 = vld [vmem:[%s0 + $0x100] sm:$0xff]
    %v62 = vld [vmem:[%s0 + $0x108] sm:$0xff]
    %v63 = vld [vmem:[%s0 + $0x110] sm:$0xff]
    %v64 = vld [vmem:[%s0 + $0x118] sm:$0xff]
    %v65 = vld [vmem:[%s0 + $0x120] sm:$0xff]
    %v66 = vld [vmem:[%s0 + $0x128] sm:$0xf]
    %v67 = vpack.c.bf16 %v30, %v29
    %v68 = vpack.c.bf16 %v32, %v31
    %v69 = vpack.c.bf16 %v34, %v33
    %v70 = vpack.c.bf16 %v36, %v35
    %v71 = vpack.c.bf16 %v38, %v37
    %v72 = vpack.c.bf16 %v40, %v39
    %v73 = vpack.c.bf16 %v42, %v41
    %v74 = vpack.c.bf16 %v44, %v43
    %v75 = vpack.c.bf16 %v46, %v45
    %v76 = vpack.c.bf16 %v48, %v47
    %v77 = vpack.c.bf16 %v50, %v49
    %v78 = vpack.c.bf16 %v52, %v51
    %v79 = vpack.c.bf16 %v54, %v53
    %v80 = vpack.c.bf16 %v56, %v55
    %v81 = vpack.c.bf16 %v58, %v57
    %v82 = vpack.c.bf16 %v60, %v59
    %v83 = vpack.c.bf16 %v62, %v61
    %v84 = vpack.c.bf16 %v64, %v63
    %v85 = vpack.c.bf16 %v66, %v65
    %v86 = vld [vmem:[%s1] sm:$0xf]
    %v87 = vld [vmem:[%s1 + $0x4] sm:$0xf]
    %v88 = vld [vmem:[%s1 + $0x8] sm:$0xf]
    %v89 = vld [vmem:[%s1 + $0xc] sm:$0xf]
    %v90 = vld [vmem:[%s1 + $0x10] sm:$0xf]
    %v91 = vld [vmem:[%s1 + $0x14] sm:$0xf]
    %v92 = vld [vmem:[%s1 + $0x18] sm:$0xf]
    %v93 = vld [vmem:[%s1 + $0x1c] sm:$0xf]
    %v94 = vld [vmem:[%s2] sm:$0xff]
    %v95 = vld [vmem:[%s2 + $0x8] sm:$0xff]
    %v96 = vld [vmem:[%s2 + $0x10] sm:$0xff]
    %v97 = vld [vmem:[%s2 + $0x18] sm:$0xff]
    %v98 = vld [vmem:[%s2 + $0x20] sm:$0xff]
    %v99 = vld [vmem:[%s2 + $0x28] sm:$0xff]
    %v100 = vld [vmem:[%s2 + $0x30] sm:$0xff]
    %v101 = vld [vmem:[%s2 + $0x38] sm:$0xff]
    %103 = vset.pattern.permute.xlu0 0
    %104 = vperm.xlu0 %103, %v94
    %v105 = vpop.permute.xlu0 %104
    %108 = vset.pattern.permute.xlu0 0
    %109 = vperm.xlu0 %108, %v95
    %v110 = vpop.permute.xlu0 %109
    %113 = vset.pattern.permute.xlu0 0
    %114 = vperm.xlu0 %113, %v96
    %v115 = vpop.permute.xlu0 %114
    %118 = vset.pattern.permute.xlu0 0
    %119 = vperm.xlu0 %118, %v97
    %v120 = vpop.permute.xlu0 %119
    %123 = vset.pattern.permute.xlu0 0
    %124 = vperm.xlu0 %123, %v98
    %v125 = vpop.permute.xlu0 %124
    %128 = vset.pattern.permute.xlu0 0
    %129 = vperm.xlu0 %128, %v99
    %v130 = vpop.permute.xlu0 %129
    %133 = vset.pattern.permute.xlu0 0
    %134 = vperm.xlu0 %133, %v100
    %v135 = vpop.permute.xlu0 %134
    %138 = vset.pattern.permute.xlu0 0
    %139 = vperm.xlu0 %138, %v101
    %v140 = vpop.permute.xlu0 %139
    %v150 = vunpack.c.l.b16 %v86
    %v151 = vunpack.c.l.b16 %v87
    %v152 = vunpack.c.l.b16 %v88
    %v153 = vunpack.c.l.b16 %v89
    %v154 = vunpack.c.l.b16 %v90
    %v155 = vunpack.c.l.b16 %v91
    %v156 = vunpack.c.l.b16 %v92
    %v157 = vunpack.c.l.b16 %v93
    %v158 = vpack.c.b16 %v151, %v150
    %v159 = vpack.c.b16 %v153, %v152
    %v160 = vpack.c.b16 %v155, %v154
    %v161 = vpack.c.b16 %v157, %v156
    %vm162 = vcmask 261120
    %v164 = vsel %vm162, %v158, 0
    %v167 = vsel %vm162, %v159, 0
    %v170 = vsel %vm162, %v160, 0
    %v173 = vsel %vm162, %v161, 0
    %v176 = vsel %vm162, %v67, 0
    %v179 = vsel %vm162, %v68, 0
    %v182 = vsel %vm162, %v69, 0
    %v185 = vsel %vm162, %v70, 0
    %v188 = vsel %vm162, %v71, 0
    %v191 = vsel %vm162, %v72, 0
    %v194 = vsel %vm162, %v73, 0
    %v197 = vsel %vm162, %v74, 0
    %v200 = vsel %vm162, %v75, 0
    %v203 = vsel %vm162, %v76, 0
    %v206 = vsel %vm162, %v77, 0
    %v209 = vsel %vm162, %v78, 0
    %v212 = vsel %vm162, %v79, 0
    %v215 = vsel %vm162, %v80, 0
    %v218 = vsel %vm162, %v81, 0
    %v221 = vsel %vm162, %v82, 0
    %v224 = vsel %vm162, %v83, 0
    %v227 = vsel %vm162, %v84, 0
    %v230 = vsel %vm162, %v85, 0
    %232 = vmatprep.subr.bf16.mxu0 0
    %233 = vmatpush1.bf16.xpose.msra.mxu0 %v176
    %234 = vmatprep.subr.bf16.mxu0 0
    %235 = vmatpush1.bf16.xpose.msra.mxu0 %v179
    %236 = vmatprep.subr.bf16.mxu0 0
    %237 = vmatpush1.bf16.xpose.msra.mxu0 %v182
    %238 = vmatprep.subr.bf16.mxu0 0
    %239 = vmatpush1.bf16.xpose.msra.mxu0 %v185
    %240 = vmatprep.subr.bf16.mxu0 0
    %241 = vmatpush1.bf16.xpose.msra.mxu0 %v188
    %242 = vmatprep.subr.bf16.mxu0 0
    %243 = vmatpush1.bf16.xpose.msra.mxu0 %v191
    %244 = vmatprep.subr.bf16.mxu0 0
    %245 = vmatpush1.bf16.xpose.msra.mxu0 %v194
    %246 = vmatprep.subr.bf16.mxu0 0
    %247 = vmatpush1.bf16.xpose.msra.mxu0 %v197
    %248 = vmatprep.subr.bf16.mxu0 0
    %249 = vmatpush1.bf16.xpose.msra.mxu0 %v200
    %250 = vmatprep.subr.bf16.mxu0 0
    %251 = vmatpush1.bf16.xpose.msra.mxu0 %v203
    %252 = vmatprep.subr.bf16.mxu0 0
    %253 = vmatpush1.bf16.xpose.msra.mxu0 %v206
    %254 = vmatprep.subr.bf16.mxu0 0
    %255 = vmatpush1.bf16.xpose.msra.mxu0 %v209
    %256 = vmatprep.subr.bf16.mxu0 0
    %257 = vmatpush1.bf16.xpose.msra.mxu0 %v212
    %258 = vmatprep.subr.bf16.mxu0 0
    %259 = vmatpush1.bf16.xpose.msra.mxu0 %v215
    %260 = vmatprep.subr.bf16.mxu0 0
    %261 = vmatpush1.bf16.xpose.msra.mxu0 %v218
    %262 = vmatprep.subr.bf16.mxu0 0
    %263 = vmatpush1.bf16.xpose.msra.mxu0 %v221
    %264 = vmatprep.mubr.bf16.mxu0 0
    %265 = vmatmul.mubr.bf16.gmra.mrb[0].mxu0 %v164
    %v266 = vpop.f32.mrb[0].mxu0
    %v267 = vadd.f32 %v105, %v266
    %v268 = vpop.f32.mrb[0].mxu0
    %v269 = vadd.f32 %v105, %v268
    %v270 = vpop.f32.mrb[0].mxu0
    %v271 = vadd.f32 %v110, %v270
    %v272 = vpop.f32.mrb[0].mxu0
    %v273 = vadd.f32 %v110, %v272
    %274 = vmatprep.mubr.bf16.mxu0 0
    %275 = vmatmul.mubr.bf16.gmra.mrb[0].mxu0 %v167
    %v276 = vpop.f32.mrb[0].mxu0
    %v277 = vadd.f32 %v115, %v276
    %v278 = vpop.f32.mrb[0].mxu0
    %v279 = vadd.f32 %v115, %v278
    %v280 = vpop.f32.mrb[0].mxu0
    %v281 = vadd.f32 %v120, %v280
    %v282 = vpop.f32.mrb[0].mxu0
    %v283 = vadd.f32 %v120, %v282
    %284 = vmatprep.mubr.bf16.mxu0 0
    %285 = vmatmul.mubr.bf16.gmra.mrb[0].mxu0 %v170
    %v286 = vpop.f32.mrb[0].mxu0
    %v287 = vadd.f32 %v125, %v286
    %v288 = vpop.f32.mrb[0].mxu0
    %v289 = vadd.f32 %v125, %v288
    %v290 = vpop.f32.mrb[0].mxu0
    %v291 = vadd.f32 %v130, %v290
    %v292 = vpop.f32.mrb[0].mxu0
    %v293 = vadd.f32 %v130, %v292
    %294 = vmatprep.mubr.bf16.mxu0 0
    %295 = vmatmul.mubr.bf16.gmra.mrb[0].mxu0 %v173
    %v296 = vpop.f32.mrb[0].mxu0
    %v297 = vadd.f32 %v135, %v296
    %v298 = vpop.f32.mrb[0].mxu0
    %v299 = vadd.f32 %v135, %v298
    %v300 = vpop.f32.mrb[0].mxu0
    %v301 = vadd.f32 %v140, %v300
    %v302 = vpop.f32.mrb[0].mxu0
    %v303 = vadd.f32 %v140, %v302
    %304 = vdwg.mxu0
    %305 = vmatprep.subr.bf16.mxu0 0
    %306 = vmatpush1.bf16.xpose.msra.mxu0 %v224
    %307 = vmatprep.subr.bf16.mxu0 0
    %308 = vmatpush1.bf16.xpose.msra.mxu0 %v227
    %309 = vmatprep.subr.bf16.mxu0 0
    %310 = vmatpush1.bf16.xpose.msra.mxu0 %v230
    %311 = vmatprep.subr.bf16.mxu0 0
    %312 = vmatpush1.bf16.xpose.msra.mxu0 0
    %313 = vmatprep.subr.bf16.mxu0 0
    %314 = vmatpush1.bf16.xpose.msra.mxu0 0
    %315 = vmatprep.subr.bf16.mxu0 0
    %316 = vmatpush1.bf16.xpose.msra.mxu0 0
    %317 = vmatprep.subr.bf16.mxu0 0
    %318 = vmatpush1.bf16.xpose.msra.mxu0 0
    %319 = vmatprep.subr.bf16.mxu0 0
    %320 = vmatpush1.bf16.xpose.msra.mxu0 0
    %321 = vmatprep.subr.bf16.mxu0 0
    %322 = vmatpush1.bf16.xpose.msra.mxu0 0
    %323 = vmatprep.subr.bf16.mxu0 0
    %324 = vmatpush1.bf16.xpose.msra.mxu0 0
    %325 = vmatprep.subr.bf16.mxu0 0
    %326 = vmatpush1.bf16.xpose.msra.mxu0 0
    %327 = vmatprep.subr.bf16.mxu0 0
    %328 = vmatpush1.bf16.xpose.msra.mxu0 0
    %329 = vmatprep.subr.bf16.mxu0 0
    %330 = vmatpush1.bf16.xpose.msra.mxu0 0
    %331 = vmatprep.subr.bf16.mxu0 0
    %332 = vmatpush1.bf16.xpose.msra.mxu0 0
    %333 = vmatprep.subr.bf16.mxu0 0
    %334 = vmatpush1.bf16.xpose.msra.mxu0 0
    %335 = vmatprep.subr.bf16.mxu0 0
    %336 = vmatpush1.bf16.xpose.msra.mxu0 0
    %337 = vmatprep.mubr.bf16.mxu0 0
    %338 = vmatmul.mubr.bf16.gmra.mrb[0].mxu0 %v164
    %v339 = vpop.f32.mrb[0].mxu0
    %v340 = vadd.f32 %v105, %v339
    %v341 = vpop.f32.mrb[0].mxu0
    %v342 = vpop.f32.mrb[0].mxu0
    %v343 = vadd.f32 %v110, %v342
    %v344 = vpop.f32.mrb[0].mxu0
    %345 = vmatprep.mubr.bf16.mxu0 0
    %346 = vmatmul.mubr.bf16.gmra.mrb[0].mxu0 %v167
    %v347 = vpop.f32.mrb[0].mxu0
    %v348 = vadd.f32 %v115, %v347
    %v349 = vpop.f32.mrb[0].mxu0
    %v350 = vpop.f32.mrb[0].mxu0
    %v351 = vadd.f32 %v120, %v350
    %v352 = vpop.f32.mrb[0].mxu0
    %353 = vmatprep.mubr.bf16.mxu0 0
    %354 = vmatmul.mubr.bf16.gmra.mrb[0].mxu0 %v170
    %v355 = vpop.f32.mrb[0].mxu0
    %v356 = vadd.f32 %v125, %v355
    %v357 = vpop.f32.mrb[0].mxu0
    %v358 = vpop.f32.mrb[0].mxu0
    %v359 = vadd.f32 %v130, %v358
    %v360 = vpop.f32.mrb[0].mxu0
    %361 = vmatprep.mubr.bf16.mxu0 0
    %362 = vmatmul.mubr.bf16.gmra.mrb[0].mxu0 %v173
    %v363 = vpop.f32.mrb[0].mxu0
    %v364 = vadd.f32 %v135, %v363
    %v365 = vpop.f32.mrb[0].mxu0
    %v366 = vpop.f32.mrb[0].mxu0
    %v367 = vadd.f32 %v140, %v366
    %v368 = vpop.f32.mrb[0].mxu0
    %369 = vdwg.mxu0
    %v370 = vmax.f32 %v267, 0.0
    %v371 = vmax.f32 %v269, 0.0
    %v372 = vmax.f32 %v340, 0.0
    %v373 = vmax.f32 %v271, 0.0
    %v374 = vmax.f32 %v273, 0.0
    %v375 = vmax.f32 %v343, 0.0
    %v376 = vmax.f32 %v277, 0.0
    %v377 = vmax.f32 %v279, 0.0
    %v378 = vmax.f32 %v348, 0.0
    %v379 = vmax.f32 %v281, 0.0
    %v380 = vmax.f32 %v283, 0.0
    %v381 = vmax.f32 %v351, 0.0
    %v382 = vmax.f32 %v287, 0.0
    %v383 = vmax.f32 %v289, 0.0
    %v384 = vmax.f32 %v356, 0.0
    %v385 = vmax.f32 %v291, 0.0
    %v386 = vmax.f32 %v293, 0.0
    %v387 = vmax.f32 %v359, 0.0
    %v388 = vmax.f32 %v297, 0.0
    %v389 = vmax.f32 %v299, 0.0
    %v390 = vmax.f32 %v364, 0.0
    %v391 = vmax.f32 %v301, 0.0
    %v392 = vmax.f32 %v303, 0.0
    %v393 = vmax.f32 %v367, 0.0
    %v394 = vld [vmem:[%s3] sm:$0xf]
    %v395 = vld [vmem:[%s3 + $0x4] sm:$0xf]
    %v396 = vld [vmem:[%s3 + $0x8] sm:$0xf]
    %v397 = vld [vmem:[%s3 + $0xc] sm:$0xf]
    %v398 = vpack.c.bf16 %v373, %v370
    %v399 = vpack.c.bf16 %v374, %v371
    %v400 = vpack.c.bf16 %v375, %v372
    %v401 = vpack.c.bf16 %v379, %v376
    %v402 = vpack.c.bf16 %v380, %v377
    %v403 = vpack.c.bf16 %v381, %v378
    %v404 = vpack.c.bf16 %v385, %v382
    %v405 = vpack.c.bf16 %v386, %v383
    %v406 = vpack.c.bf16 %v387, %v384
    %v407 = vpack.c.bf16 %v391, %v388
    %v408 = vpack.c.bf16 %v392, %v389
    %v409 = vpack.c.bf16 %v393, %v390
    %v410 = vld [vmem:[%s4] sm:$0xff]
    %v411 = vld [vmem:[%s4 + $0x8] sm:$0xff]
    %v412 = vld [vmem:[%s4 + $0x10] sm:$0xff]
    %v413 = vld [vmem:[%s4 + $0x18] sm:$0xff]
    %415 = vset.pattern.permute.xlu0 0
    %416 = vperm.xlu0 %415, %v410
    %v417 = vpop.permute.xlu0 %416
    %420 = vset.pattern.permute.xlu0 0
    %421 = vperm.xlu0 %420, %v411
    %v422 = vpop.permute.xlu0 %421
    %425 = vset.pattern.permute.xlu0 0
    %426 = vperm.xlu0 %425, %v412
    %v427 = vpop.permute.xlu0 %426
    %430 = vset.pattern.permute.xlu0 0
    %431 = vperm.xlu0 %430, %v413
    %v432 = vpop.permute.xlu0 %431
    %v438 = vunpack.c.l.b16 %v394
    %v439 = vunpack.c.l.b16 %v395
    %v440 = vunpack.c.l.b16 %v396
    %v441 = vunpack.c.l.b16 %v397
    %v442 = vpack.c.b16 %v439, %v438
    %v443 = vpack.c.b16 %v441, %v440
    %vm444 = vcmask 523264
    %v446 = vsel %vm444, %v442, 0
    %v449 = vsel %vm444, %v443, 0
    %451 = vmatprep.subr.bf16.mxu0 %v399
    %452 = vmatpush1.bf16.msra.mxu0 %v398
    %453 = vmatprep.subr.bf16.mxu0 %v402
    %454 = vmatpush1.bf16.msra.mxu0 %v401
    %455 = vmatprep.subr.bf16.mxu0 %v405
    %456 = vmatpush1.bf16.msra.mxu0 %v404
    %457 = vmatprep.subr.bf16.mxu0 %v408
    %458 = vmatpush1.bf16.msra.mxu0 %v407
    %459 = vmatprep.subr.bf16.mxu0 0
    %460 = vmatpush1.bf16.msra.mxu0 0
    %461 = vmatprep.subr.bf16.mxu0 0
    %462 = vmatpush1.bf16.msra.mxu0 0
    %463 = vmatprep.subr.bf16.mxu0 0
    %464 = vmatpush1.bf16.msra.mxu0 0
    %465 = vmatprep.subr.bf16.mxu0 0
    %466 = vmatpush1.bf16.msra.mxu0 0
    %467 = vmatprep.subr.bf16.mxu0 0
    %468 = vmatpush1.bf16.msra.mxu0 0
    %469 = vmatprep.subr.bf16.mxu0 0
    %470 = vmatpush1.bf16.msra.mxu0 0
    %471 = vmatprep.subr.bf16.mxu0 0
    %472 = vmatpush1.bf16.msra.mxu0 0
    %473 = vmatprep.subr.bf16.mxu0 0
    %474 = vmatpush1.bf16.msra.mxu0 0
    %475 = vmatprep.subr.bf16.mxu0 0
    %476 = vmatpush1.bf16.msra.mxu0 0
    %477 = vmatprep.subr.bf16.mxu0 0
    %478 = vmatpush1.bf16.msra.mxu0 0
    %479 = vmatprep.subr.bf16.mxu0 0
    %480 = vmatpush1.bf16.msra.mxu0 0
    %481 = vmatprep.subr.bf16.mxu0 0
    %482 = vmatpush1.bf16.msra.mxu0 0
    %483 = vmatprep.mubr.bf16.mxu0 0
    %484 = vmatmul.mubr.bf16.gmra.mrb[0].mxu0 %v446
    %v485 = vpop.f32.mrb[0].mxu0
    %v486 = vadd.f32 %v417, %v485
    %v487 = vpop.f32.mrb[0].mxu0
    %v488 = vadd.f32 %v417, %v487
    %v489 = vpop.f32.mrb[0].mxu0
    %v490 = vadd.f32 %v422, %v489
    %v491 = vpop.f32.mrb[0].mxu0
    %v492 = vadd.f32 %v422, %v491
    %493 = vmatprep.mubr.bf16.mxu0 0
    %494 = vmatmul.mubr.bf16.gmra.mrb[0].mxu0 %v449
    %v495 = vpop.f32.mrb[0].mxu0
    %v496 = vadd.f32 %v427, %v495
    %v497 = vpop.f32.mrb[0].mxu0
    %v498 = vadd.f32 %v427, %v497
    %v499 = vpop.f32.mrb[0].mxu0
    %v500 = vadd.f32 %v432, %v499
    %v501 = vpop.f32.mrb[0].mxu0
    %v502 = vadd.f32 %v432, %v501
    %503 = vdwg.mxu0
    %504 = vmatprep.subr.bf16.mxu0 0
    %505 = vmatpush1.bf16.msra.mxu0 %v400
    %506 = vmatprep.subr.bf16.mxu0 0
    %507 = vmatpush1.bf16.msra.mxu0 %v403
    %508 = vmatprep.subr.bf16.mxu0 0
    %509 = vmatpush1.bf16.msra.mxu0 %v406
    %510 = vmatprep.subr.bf16.mxu0 0
    %511 = vmatpush1.bf16.msra.mxu0 %v409
    %512 = vmatprep.subr.bf16.mxu0 0
    %513 = vmatpush1.bf16.msra.mxu0 0
    %514 = vmatprep.subr.bf16.mxu0 0
    %515 = vmatpush1.bf16.msra.mxu0 0
    %516 = vmatprep.subr.bf16.mxu0 0
    %517 = vmatpush1.bf16.msra.mxu0 0
    %518 = vmatprep.subr.bf16.mxu0 0
    %519 = vmatpush1.bf16.msra.mxu0 0
    %520 = vmatprep.subr.bf16.mxu0 0
    %521 = vmatpush1.bf16.msra.mxu0 0
    %522 = vmatprep.subr.bf16.mxu0 0
    %523 = vmatpush1.bf16.msra.mxu0 0
    %524 = vmatprep.subr.bf16.mxu0 0
    %525 = vmatpush1.bf16.msra.mxu0 0
    %526 = vmatprep.subr.bf16.mxu0 0
    %527 = vmatpush1.bf16.msra.mxu0 0
    %528 = vmatprep.subr.bf16.mxu0 0
    %529 = vmatpush1.bf16.msra.mxu0 0
    %530 = vmatprep.subr.bf16.mxu0 0
    %531 = vmatpush1.bf16.msra.mxu0 0
    %532 = vmatprep.subr.bf16.mxu0 0
    %533 = vmatpush1.bf16.msra.mxu0 0
    %534 = vmatprep.subr.bf16.mxu0 0
    %535 = vmatpush1.bf16.msra.mxu0 0
    %536 = vmatprep.mubr.bf16.mxu0 0
    %537 = vmatmul.mubr.bf16.gmra.mrb[0].mxu0 %v446
    %v538 = vpop.f32.mrb[0].mxu0
    %v539 = vadd.f32 %v417, %v538
    %v540 = vpop.f32.mrb[0].mxu0
    %v541 = vpop.f32.mrb[0].mxu0
    %v542 = vadd.f32 %v422, %v541
    %v543 = vpop.f32.mrb[0].mxu0
    %544 = vmatprep.mubr.bf16.mxu0 0
    %545 = vmatmul.mubr.bf16.gmra.mrb[0].mxu0 %v449
    %v546 = vpop.f32.mrb[0].mxu0
    %v547 = vadd.f32 %v427, %v546
    %v548 = vpop.f32.mrb[0].mxu0
    %v549 = vpop.f32.mrb[0].mxu0
    %v550 = vadd.f32 %v432, %v549
    %v551 = vpop.f32.mrb[0].mxu0
    %552 = vdwg.mxu0
    %v553 = vmax.f32 %v486, 0.0
    %v554 = vmax.f32 %v488, 0.0
    %v555 = vmax.f32 %v539, 0.0
    %v556 = vmax.f32 %v490, 0.0
    %v557 = vmax.f32 %v492, 0.0
    %v558 = vmax.f32 %v542, 0.0
    %v559 = vmax.f32 %v496, 0.0
    %v560 = vmax.f32 %v498, 0.0
    %v561 = vmax.f32 %v547, 0.0
    %v562 = vmax.f32 %v500, 0.0
    %v563 = vmax.f32 %v502, 0.0
    %v564 = vmax.f32 %v550, 0.0
    %v565 = vld [vmem:[%s5] sm:$0xff]
    %v566 = vld [vmem:[%s5 + $0x8] sm:$0xff]
    %v567 = vld [vmem:[%s5 + $0x10] sm:$0xff]
    %v568 = vld [vmem:[%s5 + $0x18] sm:$0xff]
    %570 = vset.pattern.permute.xlu0 0
    %571 = vperm.xlu0 %570, %v565
    %v572 = vpop.permute.xlu0 %571
    %575 = vset.pattern.permute.xlu0 0
    %576 = vperm.xlu0 %575, %v566
    %v577 = vpop.permute.xlu0 %576
    %580 = vset.pattern.permute.xlu0 0
    %581 = vperm.xlu0 %580, %v567
    %v582 = vpop.permute.xlu0 %581
    %585 = vset.pattern.permute.xlu0 0
    %586 = vperm.xlu0 %585, %v568
    %v587 = vpop.permute.xlu0 %586
    %v589 = vmul.f32 %v553, %v572
    %v590 = vmul.f32 %v554, %v572
    %v591 = vmul.f32 %v555, %v572
    %v592 = vmul.f32 %v556, %v577
    %v593 = vmul.f32 %v557, %v577
    %v594 = vmul.f32 %v558, %v577
    %v595 = vmul.f32 %v559, %v582
    %v596 = vmul.f32 %v560, %v582
    %v597 = vmul.f32 %v561, %v582
    %v598 = vmul.f32 %v562, %v587
    %v599 = vmul.f32 %v563, %v587
    %v600 = vmul.f32 %v564, %v587
    %v601 = vadd.f32 %v589, %v592
    %v602 = vadd.f32 %v601, %v595
    %v603 = vadd.f32 %v602, %v598
    %v604 = vrot.slane %v603, 4
    %v605 = vadd.f32 %v603, %v604
    %v606 = vrot.slane %v605, 2
    %v607 = vadd.f32 %v605, %v606
    %v608 = vrot.slane %v607, 1
    %v609 = vadd.f32 %v607, %v608
    %v610 = vadd.f32 %v590, %v593
    %v611 = vadd.f32 %v610, %v596
    %v612 = vadd.f32 %v611, %v599
    %v613 = vrot.slane %v612, 4
    %v614 = vadd.f32 %v612, %v613
    %v615 = vrot.slane %v614, 2
    %v616 = vadd.f32 %v614, %v615
    %v617 = vrot.slane %v616, 1
    %v618 = vadd.f32 %v616, %v617
    %vm619 = vcmask 359424
    %v620 = vsel %vm619, %v591, 0.0
    %v621 = vsel %vm619, %v594, 0.0
    %v622 = vadd.f32 %v620, %v621
    %v623 = vsel %vm619, %v597, 0.0
    %v624 = vadd.f32 %v622, %v623
    %v625 = vsel %vm619, %v600, 0.0
    %v626 = vadd.f32 %v624, %v625
    %v627 = vrot.slane %v626, 4
    %v628 = vadd.f32 %v626, %v627
    %v629 = vrot.slane %v628, 2
    %v630 = vadd.f32 %v628, %v629
    %v631 = vrot.slane %v630, 1
    %v632 = vadd.f32 %v630, %v631
    %s633 = sld [smem:[#allocation2]]
    %v634 = vstv %s633
    %v635 = vadd.f32 %v609, %v634
    %v636 = vadd.f32 %v618, %v634
    %v637 = vadd.f32 %v632, %v634
    %v641 = vcombine.low %v635, %v636
    %v643 = vunpack.c.l.s4 1966171168
    %v644 = vunpack.c.0.s8 %v643
    %v645 = vlaneseq
    %v646 = vshrl.u32 %v645, 7
    %v647 = vsub.s32 %v644, %v646
    %v648 = vrot.slane %v641, %v647
    %v650 = vunpack.c.l.s4 1966171168
    %v651 = vunpack.c.0.s8 %v650
    %v652 = vlaneseq
    %v653 = vshrl.u32 %v652, 7
    %v654 = vsub.s32 %v651, %v653
    %v655 = vrot.slane %v637, %v654
    %v656 = vcombine.low %v648, %v655
    %v658 = vunpack.c.l.s4 1966171168
    %v659 = vunpack.c.0.s8 %v658
    %v660 = vlaneseq
    %v661 = vshrl.u32 %v660, 7
    %v662 = vsub.s32 %v659, %v661
    %v663 = vrot.slane %v656, %v662
    %v665 = vlaneseq
    %vm666 = vcmp.ge.s32.totalorder %v665, 0
    %vm667 = vcmp.lt.s32.totalorder %v665, 300
    %vm668 = vmand %vm666, %vm667
    %669 = vst.msk [vmem:[#allocation3] sm:$0x7] %vm668, %v663
    // Predicated region
    $region30: #{tpu_custom_call.1} parent=1 // pred_check
      _
    $region31: #{tpu_custom_call.1} parent=1 // pred_check_branch
      %671 = sbr.rel (0) target = $region33
    $region32: #{tpu_custom_call.1} parent=1 // pred_region
      %s673 = ssub.s32 48, 48
      %674 = vsyncadd [#allocation4], %s673
      %s676 = sshll.u32 [#allocation3], 4
      %s677 = int_to_ptr.vmem [resolvable:$true] %s676
      %679 = dma.vmem_to_hbm [thread:$0]  %s677, 48, %s7, [#allocation4]
    $region33: #{tpu_custom_call.1} parent=1 // pred_fallthru
      _
    // Predicated region
    $region34: #{tpu_custom_call.1} parent=1 // pred_check
      _
    $region35: #{tpu_custom_call.1} parent=1 // pred_check_branch
      %681 = sbr.rel (0) target = $region37
    $region36: #{tpu_custom_call.1} parent=1 // pred_region
      %682 = dma.done [#allocation4], 48
    $region37: #{tpu_custom_call.1} parent=1 // pred_fallthru
      _
    %683 = vsyncpa [#allocation4], 1

</llo_original>
